<compile_context>
chip_gen: v6e
topology: v6e:2x2x1
jax: 0.10.0
libtpu: 0.0.40
codegen_flags: <defaults>
</compile_context>

<pallas_src>
import functools
import math

import jax
import jax.numpy as jnp
import numpy as np
from jax.experimental import pallas as pl
from jax.experimental.pallas import tpu as pltpu


# ----------------------------------------------------------------------------
# Delayed scalar computation (`_reset_add_pixels`), done in plain Python.
# ----------------------------------------------------------------------------
def _closest_integer(v: float) -> int:
    # round-half-away-from-zero (the reference closest_integer could use
    # banker's rounding; only exact .5 cases would differ).
    return int(math.floor(v + 0.5)) if v >= 0.0 else int(math.ceil(v - 0.5))


def _upper_integer(v: float) -> int:
    return int(math.ceil(v))


def _add_pixels_scalar(length_in: float, length_out: float, pixels_in: int) -> int:
    return _upper_integer(
        _closest_integer((length_out - length_in) * pixels_in / length_in) / 2.0
    )


# ----------------------------------------------------------------------------
# Pallas kernel: zero-pad a field by (pad_y, pad_x) on the last two axes, i.e.
# torch.nn.functional.pad(x, self._paddings) for positive _add_pixels.
# The padded block is assembled in VMEM (zero concat on W then H) and written
# with a single lane-dense full-block store.
# ----------------------------------------------------------------------------
def _pad_field_kernel(x_ref, o_ref, *, pad_y, pad_x):
    nb, cb, h, w = x_ref.shape
    dt = o_ref.dtype
    blk = x_ref[...]
    if pad_x > 0:
        zx = jnp.zeros((nb, cb, h, pad_x), dt)
        blk = jnp.concatenate([zx, blk, zx], axis=3)
    if pad_y > 0:
        zy = jnp.zeros((nb, cb, pad_y, w + 2 * pad_x), dt)
        blk = jnp.concatenate([zy, blk, zy], axis=2)
    o_ref[...] = blk  # one dense, unmasked store of the whole output block


def pad_field(x, pad_y, pad_x):
    # Zero padding -> the kernel would be a pure HBM copy; skip it entirely.
    if pad_y == 0 and pad_x == 0:
        return x

    n, c, h, w = x.shape
    hp, wp = h + 2 * pad_y, w + 2 * pad_x
    itemsize = jnp.dtype(x.dtype).itemsize

    # Generation-aware VMEM budget: ~half of physical capacity (32 MiB on
    # v7x's 64 MiB, 64 MiB on v5e/v6e's 128 MiB).  Fall back conservatively.
    try:
        vmem_phys = int(pltpu.get_tpu_info().vmem_capacity_bytes)
    except Exception:  # no TPU query available -> assume smallest (v7x)
        vmem_phys = 64 * 1024 * 1024
    budget = vmem_phys // 2

    # Tile C only if a double-buffered whole-sample (in + out) block would not
    # fit comfortably in ~half the budget; otherwise keep the block large so
    # v5e/v6e are not per-grid-step-overhead bound.
    per_c_block_bytes = (h * w + hp * wp) * itemsize
    max_c_tile = max(1, (budget // 2) // max(1, 2 * per_c_block_bytes))
    c_tile = 1
    for d in range(1, c + 1):
        if c % d == 0 and d <= max_c_tile:
            c_tile = d
    # TODO(synk): for fields where even a single channel's (Hp, Wp) tile blows
    # the budget, tile H in multiples of the dtype sublane packing (8 f32 /
    # 16 bf16 / 32 int8) or switch to a pure-DMA HBM->HBM strided-copy path.

    need = 2 * 2 * c_tile * per_c_block_bytes  # double-buffered in + out blocks
    vmem_limit = int(min(budget, max(need + (4 << 20), 16 << 20)))

    in_bytes = n * c * h * w * itemsize
    out_bytes = n * c * hp * wp * itemsize

    kernel = functools.partial(_pad_field_kernel, pad_y=pad_y, pad_x=pad_x)

    return pl.pallas_call(
        kernel,
        out_shape=jax.ShapeDtypeStruct((n, c, hp, wp), x.dtype),
        grid=(n, c // c_tile),
        in_specs=[pl.BlockSpec((1, c_tile, h, w), lambda i, j: (i, j, 0, 0))],
        out_specs=pl.BlockSpec((1, c_tile, hp, wp), lambda i, j: (i, j, 0, 0)),
        compiler_params=pltpu.CompilerParams(
            dimension_semantics=("parallel", "parallel"),
            vmem_limit_bytes=vmem_limit,
        ),
        cost_estimate=pl.CostEstimate(
            flops=0, transcendentals=0, bytes_accessed=in_bytes + out_bytes
        ),
    )(x)


# ----------------------------------------------------------------------------
# "Module": deterministic config matching AbstractElement.__init__ semantics.
# ----------------------------------------------------------------------------
class AbstractElementPallas:
    def __init__(self, pixels_in_xy, length_in_xy, length_out_xy):
        # pixels.input / length.input / length.output, ordered (x, y)
        self.pixels_in = tuple(pixels_in_xy)
        self.length_in = tuple(length_in_xy)
        self.length_out = tuple(length_out_xy)
        # mimics DelayedFunctions: _reset_add_pixels_ registered at init / on change
        self._add_pixels_xy = (0, 0)
        self._delayed_pending = True

    def _reset_add_pixels(self):
        self._add_pixels_xy = (
            _add_pixels_scalar(self.length_in[0], self.length_out[0], self.pixels_in[0]),
            _add_pixels_scalar(self.length_in[1], self.length_out[1], self.pixels_in[1]),
        )
        self._delayed_pending = False

    @property
    def _padding_x(self):
        return self._add_pixels_xy[0] if self._add_pixels_xy[0] > 0 else 0

    @property
    def _padding_y(self):
        return self._add_pixels_xy[1] if self._add_pixels_xy[1] > 0 else 0

    @property
    def _paddings(self):
        return (self._padding_x, self._padding_x, self._padding_y, self._padding_y)

    def forward(self, x):
        # PyTorch forward() only launches the delayed `_reset_add_pixels`
        # (pure scalar bookkeeping, done in Python -- no kernel, no host sync).
        if self._delayed_pending:
            self._reset_add_pixels()
        # Apply the module's `_paddings` to the field with the Pallas kernel to
        # exercise the tensor path the module prepares for its subclasses.
        # pad_field early-returns the input when both paddings are zero.
        # TODO(synk): negative _add_pixels (the _unpaddings / crop path) is not
        # applied to a tensor here; the abstract forward never applies it.
        padded = pad_field(x, self._padding_y, self._padding_x)
        return self._add_pixels_xy, padded


if __name__ == "__main__":
    key = jax.random.PRNGKey(0)
    x = jax.random.normal(key, (2, 4, 16, 16), dtype=jnp.float32)  # NCHW field

    # Case 1: deterministic config -> _add_pixels = (4, 2); Pallas pad kernel runs.
    elem = AbstractElementPallas(
        pixels_in_xy=(16, 16),
        length_in_xy=(1.0, 1.0),
        length_out_xy=(1.5, 1.25),
    )
    add_pixels, padded = elem.forward(x)
    jax.block_until_ready(padded)

    def ref_add(lin, lout, pin):
        return int(math.ceil(round((lout - lin) * pin / lin) / 2))

    ref_x = ref_add(1.0, 1.5, 16)    # 4
    ref_y = ref_add(1.0, 1.25, 16)   # 2
    assert add_pixels == (ref_x, ref_y), (add_pixels, ref_x, ref_y)
    assert padded.shape == (2, 4, 16 + 2 * ref_y, 16 + 2 * ref_x)

    ref_padded = np.pad(
        np.asarray(x), ((0, 0), (0, 0), (ref_y, ref_y), (ref_x, ref_x))
    )
    np.testing.assert_allclose(np.asarray(padded), ref_padded)

    # Case 2: length.output == length.input -> _add_pixels = (0, 0);
    # fast path must skip the kernel and return the field unchanged.
    elem_id = AbstractElementPallas(
        pixels_in_xy=(16, 16),
        length_in_xy=(1.0, 1.0),
        length_out_xy=(1.0, 1.0),
    )
    add_id, same = elem_id.forward(x)
    jax.block_until_ready(same)
    assert add_id == (0, 0)
    assert same.shape == x.shape
    np.testing.assert_allclose(np.asarray(same), np.asarray(x))

    print("KERNEL_OK")
</pallas_src>

<mosaic_0001>
module attributes {stable_mosaic.version = 11 : i64} {
  func.func @_pad_field_kernel(%arg0: i32, %arg1: i32, %arg2: memref<1x4x16x16xf32, #tpu.memory_space<vmem>>, %arg3: memref<1x4x20x24xf32, #tpu.memory_space<vmem>>) attributes {dimension_semantics = [#tpu.dimension_semantics<parallel>, #tpu.dimension_semantics<parallel>], iteration_bounds = array<i64: 2, 1>, scalar_prefetch = 0 : i64, scratch_operands = 0 : i64, tpu.core_type = #tpu.core_type<tc>, window_params = [{transform_indices = @transform_0, window_bounds = array<i64: 1, 4, 16, 16>}, {transform_indices = @transform_1, window_bounds = array<i64: 1, 4, 20, 24>}]} {
    %c0 = arith.constant 0 : index
    %c0_0 = arith.constant 0 : index
    %c0_1 = arith.constant 0 : index
    %c0_2 = arith.constant 0 : index
    %0 = vector.load %arg2[%c0, %c0_0, %c0_1, %c0_2] : memref<1x4x16x16xf32, #tpu.memory_space<vmem>>, vector<1x4x16x16xf32>
    %cst = arith.constant 0.000000e+00 : f32
    %1 = vector.broadcast %cst : f32 to vector<1x4x16x4xf32>
    %2 = tpu.concatenate %1, %0, %1 in 3 : vector<1x4x16x4xf32>, vector<1x4x16x16xf32>, vector<1x4x16x4xf32> -> vector<1x4x16x24xf32>
    %cst_3 = arith.constant 0.000000e+00 : f32
    %3 = vector.broadcast %cst_3 : f32 to vector<1x4x2x24xf32>
    %4 = tpu.concatenate %3, %2, %3 in 2 : vector<1x4x2x24xf32>, vector<1x4x16x24xf32>, vector<1x4x2x24xf32> -> vector<1x4x20x24xf32>
    %c0_4 = arith.constant 0 : index
    %c0_5 = arith.constant 0 : index
    %c0_6 = arith.constant 0 : index
    %c0_7 = arith.constant 0 : index
    %5 = vector.load %arg3[%c0_4, %c0_5, %c0_6, %c0_7] : memref<1x4x20x24xf32, #tpu.memory_space<vmem>>, vector<1x4x20x24xf32>
    tpu.vector_store %arg3[%c0_4, %c0_5, %c0_6, %c0_7], %4 {strides = array<i32>} : memref<1x4x20x24xf32, #tpu.memory_space<vmem>>, vector<1x4x20x24xf32>,
    return
  }
  func.func @transform_0(%arg0: i32, %arg1: i32) -> (i32, i32, i32, i32) {
    %c0_i32 = arith.constant 0 : i32
    %c0_i32_0 = arith.constant 0 : i32
    %c0_i32_1 = arith.constant 0 : i32
    return %arg0, %arg1, %c0_i32, %c0_i32_0 : i32, i32, i32, i32
  }
  func.func @transform_1(%arg0: i32, %arg1: i32) -> (i32, i32, i32, i32) {
    %c0_i32 = arith.constant 0 : i32
    %c0_i32_0 = arith.constant 0 : i32
    %c0_i32_1 = arith.constant 0 : i32
    return %arg0, %arg1, %c0_i32, %c0_i32_0 : i32, i32, i32, i32
  }
}

</mosaic_0001>

<llo_original>
// kernel: tpu_custom_call.1
$region0: #{tpu_custom_call.1}
  #allocation0 [shape = 'u32[]', space=smem, size = 0x4, offset = 0x4, fixed_abs, tag = 'smem constant byte address 0x4 - core index']
  #allocation1 [shape = 'u32[144,128]{1,0:T(1,128)}', space=vmem, size = 0x12000, scoped, tag = 'internal scratch']
  %s0 = inlined_call_operand.hbm [shape: f32[2,4,16,16], index: 0, kind: input, shape index: {}]
  %s1 = inlined_call_operand.vmem [shape: f32[2,4,20,24], index: 1, kind: output, shape index: {}]
  %s2 = sld [smem:[#allocation0]]
  $region41: #{tpu_custom_call.1} parent=0
    _
  %s4 = ssub.s32 1, %s2
  %s5 = scalar_select 0, %s4, %s2
  $region1: #{tpu_custom_call.1} parent=0
    #allocation2 [shape = 'u8[65536]{0}', space=vmem, size = 0x10000, scoped, tag = 'input window, operand 0']
    #allocation3 [shape = 's32[2]{0}', space=sflag, size = 0x8, scoped, tag = 'scoped memory for tpu_custom_call.1']
    %6 = vsyncpa [#allocation3], 0
    %s7 = scalar_lea.sflag [#allocation3], 1
    %8 = vsyncpa %s7, 0
    loop: start=0, step=1, limit=4
    $region2: #{tpu_custom_call.1} parent=1 // loop_pre_header
      _
    $region3: #{tpu_custom_call.1} parent=1 // loop_header
      %s10 = sphi 0, %s14
      %p11 = scmp.ge.s32.totalorder %s10, 4
      %s17 = sphi 0, %s29
      %s18 = sphi 0, %s25
      %s19 = sphi 0, %s17
      %s20 = sphi 0, %s18
      %s21 = sphi 0, %s19
      %s22 = sphi 0, %s20
      %s34 = sphi 0, %s36
      %s37 = sphi 0, %s34
      %s38 = sphi 0, %s37
      %s54 = sphi 0, %s38
      %s62 = sphi 0, %s64
      %s65 = sphi 0, %s62
      %s66 = sphi 0, %s65
      %s82 = sphi 0, %s66
    $region4: #{tpu_custom_call.1} parent=1 // loop_header_branch
      %13 = sbr.rel (%p11) target = $region8
    $region5: #{tpu_custom_call.1} parent=1 // loop_body
      %s15 = ssub.s32 %s10, 1
      %s16 = ssub.s32 %s10, 2
      %s23 = sadd.s32 1, %s18
      %p24 = scmp.ge.s32.totalorder %s23, 1
      %s25 = scalar_select %p24, 0, %s23
      %s26 = sadd.s32 1, %s17
      %s27 = scalar_select %p24, %s26, %s17
      %p28 = scmp.ge.s32.totalorder %s27, 2
      %s29 = scalar_select %p28, 0, %s27
      %s30 = ssub.s32 %s17, %s29
      %s31 = ssub.s32 %s18, %s25
      %s32 = sor.u32 %s30, %s31
      %p33 = scmp.eq.s32.totalorder %s32, 0
      %s35 = sadd.s32 %s34, 1
      %s36 = scalar_select %p33, %s34, %s35
      %p39 = pneg %p33
      %p40 = scmp.eq.s32.totalorder %s10, 1
      %p41 = por %p39, %p40
      %p42 = scmp.ne.s32.totalorder %s34, %s37
      %p43 = scmp.eq.s32.totalorder %s10, 0
      %p44 = por %p42, %p43
      %p45 = scmp.ne.s32.totalorder %s34, %s37
      %p46 = scmp.eq.s32.totalorder %s15, 1
      %p47 = por %p45, %p46
      %p48 = scmp.ne.s32.totalorder %s37, %s38
      %p49 = scmp.eq.s32.totalorder %s15, 0
      %p50 = por %p48, %p49
      %p51 = scmp.ne.s32.totalorder %s37, %s38
      %p52 = scmp.eq.s32.totalorder %s16, 1
      %p53 = por %p51, %p52
      %p55 = scmp.ne.s32.totalorder %s38, %s54
      %p56 = scmp.eq.s32.totalorder %s16, 0
      %p57 = por %p55, %p56
      %s58 = ssub.s32 %s17, %s29
      %s59 = ssub.s32 %s18, %s25
      %s60 = sor.u32 %s58, %s59
      %p61 = scmp.eq.s32.totalorder %s60, 0
      %s63 = sadd.s32 %s62, 1
      %s64 = scalar_select %p61, %s62, %s63
      %p67 = pneg %p61
      %p68 = scmp.eq.s32.totalorder %s10, 1
      %p69 = por %p67, %p68
      %p70 = scmp.ne.s32.totalorder %s62, %s65
      %p71 = scmp.eq.s32.totalorder %s10, 0
      %p72 = por %p70, %p71
      %p73 = scmp.ne.s32.totalorder %s62, %s65
      %p74 = scmp.eq.s32.totalorder %s15, 1
      %p75 = por %p73, %p74
      %p76 = scmp.ne.s32.totalorder %s65, %s66
      %p77 = scmp.eq.s32.totalorder %s15, 0
      %p78 = por %p76, %p77
      %p79 = scmp.ne.s32.totalorder %s65, %s66
      %p80 = scmp.eq.s32.totalorder %s16, 1
      %p81 = por %p79, %p80
      %p83 = scmp.ne.s32.totalorder %s66, %s82
      %p84 = scmp.eq.s32.totalorder %s16, 0
      %p85 = por %p83, %p84
      %p86 = scmp.le.s32.totalorder 1, %s10
      %p87 = scmp.lt.s32.totalorder %s10, 3
      %p88 = pnand %p86, %p87
      %p89 = pneg %p88
      // Predicated region
      $region9: #{tpu_custom_call.1} parent=5 // pred_check
        _
      $region10: #{tpu_custom_call.1} parent=5 // pred_check_branch
        %91 = sbr.rel (%p88) target = $region12
      $region11: #{tpu_custom_call.1} parent=5 // pred_region
        %s92 = ssub.s32 %s10, 1
      $region12: #{tpu_custom_call.1} parent=5 // pred_fallthru
        _
      %p93 = scmp.lt.s32.totalorder %s10, 2
      // Predicated region
      $region13: #{tpu_custom_call.1} parent=5 // pred_check
        %p94 = pneg %p93
      $region14: #{tpu_custom_call.1} parent=5 // pred_check_branch
        %96 = sbr.rel (%p94) target = $region16
      $region15: #{tpu_custom_call.1} parent=5 // pred_region
        // Predicated region
        $region17: #{tpu_custom_call.1} parent=15 // pred_check
          %p97 = pneg %p44
        $region18: #{tpu_custom_call.1} parent=15 // pred_check_branch
          %99 = sbr.rel (%p97) target = $region20
        $region19: #{tpu_custom_call.1} parent=15 // pred_region
          %s100 = sand.u32 %s34, 1
          %s101 = scalar_lea.sflag [#allocation3], %s100
          %s102 = sand.u32 %s34, 1
          %s103 = smul.addr %s102, 64
          %s104 = scalar_lea.vmem [#allocation2], %s103
          %s105 = smul.u32 4, %s18
          %s107 = ssub.s32 1024, 1024
          %108 = vsyncadd %s101, %s107
          %s109 = smul.addr %s105, 2
          %s110 = smul.addr %s17, 8
          %s111 = sadd.s32 %s109, %s110
          %s112 = smul.addr %s111, 128
          %s113 = scalar_lea.hbm %s0, %s112
          %s114 = sshll.u32 %s104, 4
          %s115 = int_to_ptr.vmem [resolvable:$true] %s114
          %120 = dma.hbm_to_vmem [thread:$0]  %s113, 1024, %s115, %s101, 128, 128, 8
        $region20: #{tpu_custom_call.1} parent=15 // pred_fallthru
          _
      $region16: #{tpu_custom_call.1} parent=5 // pred_fallthru
        _
      %p121 = scmp.le.s32.totalorder 1, %s10
      %p122 = scmp.lt.s32.totalorder %s10, 3
      %p123 = pnand %p121, %p122
      %p124 = pneg %p123
      // Predicated region
      $region21: #{tpu_custom_call.1} parent=5 // pred_check
        _
      $region22: #{tpu_custom_call.1} parent=5 // pred_check_branch
        %126 = sbr.rel (%p123) target = $region24
      $region23: #{tpu_custom_call.1} parent=5 // pred_region
        %s127 = ssub.s32 %s10, 1
        %s128 = sand.u32 %s37, 1
        %s129 = scalar_lea.sflag [#allocation3], %s128
        %s130 = sand.u32 %s37, 1
        %s131 = smul.addr %s130, 64
        %s132 = scalar_lea.vmem [#allocation2], %s131
        // Predicated region
        $region25: #{tpu_custom_call.1} parent=23 // pred_check
          %p133 = pneg %p50
        $region26: #{tpu_custom_call.1} parent=23 // pred_check_branch
          %135 = sbr.rel (%p133) target = $region28
        $region27: #{tpu_custom_call.1} parent=23 // pred_region
          %136 = dma.done %s129, 1024
        $region28: #{tpu_custom_call.1} parent=23 // pred_fallthru
          _
        %s137 = sand.u32 %s37, 1
        %s138 = scalar_lea.sflag [#allocation3], %s137
        %s139 = sand.u32 %s37, 1
        %s140 = smul.addr %s139, 64
        %s141 = scalar_lea.vmem [#allocation2], %s140
        %p142 = pneg %p50
        %p143 = pneg %p47
        %p144 = pneg %p78
        %p145 = pneg %p75
        %s146 = smul.u32 4, %s20
        %p147 = scmp.lt.s32.totalorder %s19, 1
        %s148 = scalar_select %p147, %s19, 1
        %p149 = scmp.lt.s32.totalorder %s146, 3
        %s150 = scalar_select %p149, %s146, 3
        %s151 = smul.addr %s150, 3
        %s152 = smul.addr %s148, 12
        %s153 = sadd.s32 %s151, %s152
        %s154 = smul.addr %s153, 8
        %s155 = scalar_lea.vmem %s1, %s154
        %s156 = smul.u32 4, %s20
        %s157 = smul.u32 4, %s20
        %p158 = scmp.lt.s32.totalorder %s19, 1
        %s159 = scalar_select %p158, %s19, 1
        %p160 = scmp.lt.s32.totalorder %s157, 3
        %s161 = scalar_select %p160, %s157, 3
        %s162 = smul.addr %s161, 3
        %s163 = smul.addr %s159, 12
        %s164 = sadd.s32 %s162, %s163
        %s165 = smul.addr %s164, 8
        %s166 = scalar_lea.vmem %s1, %s165
        %s167 = smul.u32 4, %s20
        %v168 = vld [vmem:[%s132] sm:$0xff]
        %v169 = vld [vmem:[%s132 + $0x8] sm:$0xff]
        %v170 = vld [vmem:[%s132 + $0x10] sm:$0xff]
        %v171 = vld [vmem:[%s132 + $0x18] sm:$0xff]
        %v172 = vld [vmem:[%s132 + $0x20] sm:$0xff]
        %v173 = vld [vmem:[%s132 + $0x28] sm:$0xff]
        %v174 = vld [vmem:[%s132 + $0x30] sm:$0xff]
        %v175 = vld [vmem:[%s132 + $0x38] sm:$0xff]
        %184 = vrot.lane.b32.xlu0 %v168, 4
        %v185 = vpop.permute.xlu0 %184
        %186 = vrot.lane.b32.xlu0 %v169, 4
        %v187 = vpop.permute.xlu0 %186
        %188 = vrot.lane.b32.xlu0 %v170, 4
        %v189 = vpop.permute.xlu0 %188
        %190 = vrot.lane.b32.xlu0 %v171, 4
        %v191 = vpop.permute.xlu0 %190
        %192 = vrot.lane.b32.xlu0 %v172, 4
        %v193 = vpop.permute.xlu0 %192
        %194 = vrot.lane.b32.xlu0 %v173, 4
        %v195 = vpop.permute.xlu0 %194
        %196 = vrot.lane.b32.xlu0 %v174, 4
        %v197 = vpop.permute.xlu0 %196
        %198 = vrot.lane.b32.xlu0 %v175, 4
        %v199 = vpop.permute.xlu0 %198
        %vm208 = vcmask 31744
        %v209 = vsel %vm208, 0.0, %v185
        %v210 = vsel %vm208, 0.0, %v187
        %v211 = vsel %vm208, 0.0, %v189
        %v212 = vsel %vm208, 0.0, %v191
        %v213 = vsel %vm208, 0.0, %v193
        %v214 = vsel %vm208, 0.0, %v195
        %v215 = vsel %vm208, 0.0, %v197
        %v216 = vsel %vm208, 0.0, %v199
        %vm217 = vcmask 162816
        %v218 = vsel %vm217, %v209, 0.0
        %v219 = vsel %vm217, %v210, 0.0
        %v220 = vsel %vm217, %v211, 0.0
        %v221 = vsel %vm217, %v212, 0.0
        %v222 = vsel %vm217, %v213, 0.0
        %v223 = vsel %vm217, %v214, 0.0
        %v224 = vsel %vm217, %v215, 0.0
        %v225 = vsel %vm217, %v216, 0.0
        %vm234 = vcmask 1041408
        %v235 = vrot.slane %v218, 6
        %v236 = vrot.slane %v219, 6
        %v237 = vsel %vm234, %v235, %v236
        %v238 = vrot.slane %v220, 6
        %v239 = vrot.slane %v221, 6
        %v240 = vsel %vm234, %v238, %v239
        %v241 = vrot.slane %v222, 6
        %v242 = vrot.slane %v223, 6
        %v243 = vsel %vm234, %v241, %v242
        %v244 = vrot.slane %v224, 6
        %v245 = vrot.slane %v225, 6
        %v246 = vsel %vm234, %v244, %v245
        %v259 = vsel %vm234, 0.0, %v235
        %v260 = vsel %vm234, 0.0, %v238
        %v261 = vsel %vm234, 0.0, %v241
        %v262 = vsel %vm234, 0.0, %v244
        %v263 = vsel %vm234, %v236, 0.0
        %v264 = vsel %vm234, %v239, 0.0
        %v265 = vsel %vm234, %v242, 0.0
        %v266 = vsel %vm234, %v245, 0.0
        %vm267 = vcmask 195584
        %268 = vst.msk [vmem:[%s166] sm:$0xff] %vm267, %v259
        %269 = vst.msk [vmem:[%s166 + $0x8] sm:$0xff] %vm267, %v237
        %vm270 = vcmask 191488
        %271 = vst.msk [vmem:[%s166 + $0x10] sm:$0xf] %vm270, %v263
        %272 = vst.msk [vmem:[%s166 + $0x18] sm:$0xff] %vm267, %v260
        %273 = vst.msk [vmem:[%s166 + $0x20] sm:$0xff] %vm267, %v240
        %274 = vst.msk [vmem:[%s166 + $0x28] sm:$0xf] %vm270, %v264
        %275 = vst.msk [vmem:[%s166 + $0x30] sm:$0xff] %vm267, %v261
        %276 = vst.msk [vmem:[%s166 + $0x38] sm:$0xff] %vm267, %v243
        %277 = vst.msk [vmem:[%s166 + $0x40] sm:$0xf] %vm270, %v265
        %278 = vst.msk [vmem:[%s166 + $0x48] sm:$0xff] %vm267, %v262
        %279 = vst.msk [vmem:[%s166 + $0x50] sm:$0xff] %vm267, %v246
        %280 = vst.msk [vmem:[%s166 + $0x58] sm:$0xf] %vm270, %v266
        %s281 = smul.u32 4, %s20
        %p282 = scmp.lt.s32.totalorder %s19, 1
        %s283 = scalar_select %p282, %s19, 1
        %p284 = scmp.lt.s32.totalorder %s281, 3
        %s285 = scalar_select %p284, %s281, 3
        %s286 = smul.addr %s285, 3
        %s287 = smul.addr %s283, 12
        %s288 = sadd.s32 %s286, %s287
        %s289 = smul.addr %s288, 8
        %s290 = scalar_lea.vmem %s1, %s289
        // Predicated region
        $region29: #{tpu_custom_call.1} parent=23 // pred_check
          %p291 = pneg %p75
        $region30: #{tpu_custom_call.1} parent=23 // pred_check_branch
          %293 = sbr.rel (%p291) target = $region32
        $region31: #{tpu_custom_call.1} parent=23 // pred_region
          %s294 = smul.u32 4, %s20
        $region32: #{tpu_custom_call.1} parent=23 // pred_fallthru
          _
      $region24: #{tpu_custom_call.1} parent=5 // pred_fallthru
        _
      %p295 = scmp.le.s32.totalorder 2, %s10
      // Predicated region
      $region33: #{tpu_custom_call.1} parent=5 // pred_check
        %p296 = pneg %p295
      $region34: #{tpu_custom_call.1} parent=5 // pred_check_branch
        %298 = sbr.rel (%p296) target = $region36
      $region35: #{tpu_custom_call.1} parent=5 // pred_region
        %s299 = ssub.s32 %s10, 2
        // Predicated region
        $region37: #{tpu_custom_call.1} parent=35 // pred_check
          %p300 = pneg %p81
        $region38: #{tpu_custom_call.1} parent=35 // pred_check_branch
          %302 = sbr.rel (%p300) target = $region40
        $region39: #{tpu_custom_call.1} parent=35 // pred_region
          %s303 = smul.u32 4, %s22
          %p304 = scmp.lt.s32.totalorder %s21, 1
          %s305 = scalar_select %p304, %s21, 1
          %p306 = scmp.lt.s32.totalorder %s303, 3
          %s307 = scalar_select %p306, %s303, 3
          %s308 = smul.addr %s307, 3
          %s309 = smul.addr %s305, 12
          %s310 = sadd.s32 %s308, %s309
          %s311 = smul.addr %s310, 8
          %s312 = scalar_lea.vmem %s1, %s311
        $region40: #{tpu_custom_call.1} parent=35 // pred_fallthru
          _
      $region36: #{tpu_custom_call.1} parent=5 // pred_fallthru
        _
    $region6: #{tpu_custom_call.1} parent=1 // loop_footer
      %s14 = sadd.s32 1, %s10
    $region7: #{tpu_custom_call.1} parent=1 // loop_footer_branch
      %9 = sbr.rel target = $region3
    $region8: #{tpu_custom_call.1} parent=1 // loop_exit
      _
    %313 = vsyncpa [#allocation3], 1
    %s314 = scalar_lea.sflag [#allocation3], 1
    %315 = vsyncpa %s314, 1

</llo_original>
